<compile_context>
chip_gen: v7x
topology: tpu7x:2x2x1
jax: 0.10.0
libtpu: 0.0.40
codegen_flags: <defaults>
</compile_context>

<pallas_src>
import jax
import jax.numpy as jnp
from jax.experimental import pallas as pl
from jax.experimental.pallas import tpu as pltpu

_LANE = 128


def _round_up(n, m):
    return ((n + m - 1) // m) * m


def _mlp_kernel(x_ref, w1_ref, b1_ref, w2_ref, b2_ref,
                w3_ref, b3_ref, w4_ref, b4_ref, o_ref):
    """Batch-on-lanes fused MLP: every intermediate is (hidden, tb)."""
    x = x_ref[...]                                                    # (F, tb) bf16

    h = jnp.dot(w1_ref[...], x, preferred_element_type=jnp.float32)  # (32, tb) f32
    h = jnp.maximum(h + b1_ref[...], 0.0)
    # dropout(rate=0.0) -> identity (no-op)

    h = jnp.dot(w2_ref[...], h.astype(w2_ref.dtype),
                preferred_element_type=jnp.float32)                  # (16, tb) f32
    h = jnp.maximum(h + b2_ref[...], 0.0)

    h = jnp.dot(w3_ref[...], h.astype(w3_ref.dtype),
                preferred_element_type=jnp.float32)                  # (8, tb) f32
    h = jnp.maximum(h + b3_ref[...], 0.0)

    # Final 8 -> 1 layer: a 1-wide MXU matmul would be <1% utilized; use a VPU
    # multiply + sublane (XLU) reduce in f32 instead.
    o_ref[...] = (jnp.sum(h * w4_ref[...], axis=0, keepdims=True)
                  + b4_ref[...])                                     # (1, tb)


def deeper_water_level_nn(x, params, *, tb=512):
    """Fused MLP forward.

    x: [B, F] float32.
    params: w1 (32,F), w2 (16,32), w3 (8,16) as (out,in); w4 (8,1) column;
            biases b1 (32,1), b2 (16,1), b3 (8,1), b4 (1,1), all float32.
    Returns [B, 1] float32.
    """
    B, F = x.shape

    # Lane-dense batch tile: multiple of 128, capped so the grid pipelines and
    # shards across TensorCores, but never larger than the (padded) batch.
    tb = _round_up(min(max(tb, _LANE), 2048), _LANE)
    tb = min(tb, _round_up(B, _LANE))
    B_pad = _round_up(B, tb)

    # bf16 operands halve HBM traffic for x; accumulation stays f32 on the MXU.
    x_bf = x.astype(jnp.bfloat16)
    if B_pad != B:
        x_bf = jnp.pad(x_bf, ((0, B_pad - B), (0, 0)))
    xt = x_bf.T                                          # (F, B_pad): batch on lanes

    w1 = params["w1"].astype(jnp.bfloat16)               # (32, F)
    w2 = params["w2"].astype(jnp.bfloat16)               # (16, 32)
    w3 = params["w3"].astype(jnp.bfloat16)               # (8, 16)
    w4 = params["w4"].astype(jnp.float32)                # (8, 1)  VPU path -> keep f32
    b1 = params["b1"].astype(jnp.float32)                # (32, 1)
    b2 = params["b2"].astype(jnp.float32)                # (16, 1)
    b3 = params["b3"].astype(jnp.float32)                # (8, 1)
    b4 = params["b4"].astype(jnp.float32)                # (1, 1)

    grid = (B_pad // tb,)

    def const_spec(shape):
        # tiny weights/biases: same full block every grid step (no re-DMA needed)
        return pl.BlockSpec(shape, lambda i: (0, 0))

    flops = 2 * B_pad * (F * 32 + 32 * 16 + 16 * 8 + 8)
    bytes_accessed = (B_pad * F * 2            # x (bf16)
                      + B_pad * 4              # output (f32)
                      + 2 * (32 * F + 16 * 32 + 8 * 16)   # bf16 weights
                      + 4 * (8 + 32 + 16 + 8 + 1))        # f32 w4 + biases

    out = pl.pallas_call(
        _mlp_kernel,
        out_shape=jax.ShapeDtypeStruct((1, B_pad), jnp.float32),
        grid=grid,
        in_specs=[
            pl.BlockSpec((F, tb), lambda i: (0, i)),     # x tile, batch on lanes
            const_spec(w1.shape), const_spec(b1.shape),
            const_spec(w2.shape), const_spec(b2.shape),
            const_spec(w3.shape), const_spec(b3.shape),
            const_spec(w4.shape), const_spec(b4.shape),
        ],
        out_specs=pl.BlockSpec((1, tb), lambda i: (0, i)),   # lane-dense output block
        compiler_params=pltpu.CompilerParams(
            dimension_semantics=("parallel",),
            vmem_limit_bytes=32 * 1024 * 1024,
        ),
        cost_estimate=pl.CostEstimate(
            flops=flops, transcendentals=0, bytes_accessed=bytes_accessed),
    )(xt, w1, b1, w2, b2, w3, b3, w4, b4)

    # (1, B_pad) lane-dense output -> (B, 1), dropping batch padding.
    return out.T[:B]


def init_params(key, input_features):
    """nn.Linear-style init. Weights stored (out, in); w4 stored as its (8, 1)
    transpose because the kernel consumes it on the VPU path. Biases (out, 1)."""
    dims = [(input_features, 32), (32, 16), (16, 8), (8, 1)]
    params = {}
    for idx, (fan_in, fan_out) in enumerate(dims, start=1):
        key, kw, kb = jax.random.split(key, 3)
        bound = 1.0 / float(fan_in) ** 0.5
        if idx < 4:
            w = jax.random.uniform(kw, (fan_out, fan_in), jnp.float32, -bound, bound)
        else:
            w = jax.random.uniform(kw, (fan_in, fan_out), jnp.float32, -bound, bound)
        b = jax.random.uniform(kb, (fan_out, 1), jnp.float32, -bound, bound)
        params[f"w{idx}"] = w
        params[f"b{idx}"] = b
    return params


def reference_forward(x, p):
    """f32 reference that mirrors the kernel's bf16 operand rounding."""
    def q(a):
        return a.astype(jnp.bfloat16).astype(jnp.float32)
    h = jnp.maximum(q(x) @ q(p["w1"]).T + p["b1"].T, 0.0)
    h = jnp.maximum(q(h) @ q(p["w2"]).T + p["b2"].T, 0.0)
    h = jnp.maximum(q(h) @ q(p["w3"]).T + p["b3"].T, 0.0)
    return (h * p["w4"][:, 0][None, :]).sum(-1, keepdims=True) + p["b4"].T


if __name__ == "__main__":
    key = jax.random.PRNGKey(0)
    batch, input_features = 8, 16

    key, kx = jax.random.split(key)
    x = jax.random.normal(kx, (batch, input_features), jnp.float32)
    params = init_params(key, input_features)

    out = deeper_water_level_nn(x, params)
    out = jax.block_until_ready(out)

    ref = reference_forward(x, params)
    assert out.shape == (batch, 1)
    assert jnp.allclose(out, ref, atol=1e-3, rtol=1e-3), \
        float(jnp.max(jnp.abs(out - ref)))

    print("KERNEL_OK")
</pallas_src>

<mosaic_0001>
module attributes {stable_mosaic.version = 11 : i64} {
  func.func @_mlp_kernel(%arg0: i32, %arg1: memref<16x128xbf16, #tpu.memory_space<vmem>>, %arg2: memref<32x16xbf16, #tpu.memory_space<vmem>>, %arg3: memref<32x1xf32, #tpu.memory_space<vmem>>, %arg4: memref<16x32xbf16, #tpu.memory_space<vmem>>, %arg5: memref<16x1xf32, #tpu.memory_space<vmem>>, %arg6: memref<8x16xbf16, #tpu.memory_space<vmem>>, %arg7: memref<8x1xf32, #tpu.memory_space<vmem>>, %arg8: memref<8x1xf32, #tpu.memory_space<vmem>>, %arg9: memref<1x1xf32, #tpu.memory_space<vmem>>, %arg10: memref<1x128xf32, #tpu.memory_space<vmem>>) attributes {dimension_semantics = [#tpu.dimension_semantics<parallel>], iteration_bounds = array<i64: 1>, scalar_prefetch = 0 : i64, scratch_operands = 0 : i64, tpu.core_type = #tpu.core_type<tc>, window_params = [{transform_indices = @transform_0, window_bounds = array<i64: 16, 128>}, {pipeline_mode = #tpu.pipeline_mode<synchronous>, transform_indices = @transform_1, window_bounds = array<i64: 32, 16>}, {pipeline_mode = #tpu.pipeline_mode<synchronous>, transform_indices = @transform_2, window_bounds = array<i64: 32, 1>}, {pipeline_mode = #tpu.pipeline_mode<synchronous>, transform_indices = @transform_3, window_bounds = array<i64: 16, 32>}, {pipeline_mode = #tpu.pipeline_mode<synchronous>, transform_indices = @transform_4, window_bounds = array<i64: 16, 1>}, {pipeline_mode = #tpu.pipeline_mode<synchronous>, transform_indices = @transform_5, window_bounds = array<i64: 8, 16>}, {pipeline_mode = #tpu.pipeline_mode<synchronous>, transform_indices = @transform_6, window_bounds = array<i64: 8, 1>}, {pipeline_mode = #tpu.pipeline_mode<synchronous>, transform_indices = @transform_7, window_bounds = array<i64: 8, 1>}, {pipeline_mode = #tpu.pipeline_mode<synchronous>, transform_indices = @transform_8, window_bounds = array<i64: 1, 1>}, {transform_indices = @transform_9, window_bounds = array<i64: 1, 128>}]} {
    %c0 = arith.constant 0 : index
    %c0_0 = arith.constant 0 : index
    %0 = vector.load %arg1[%c0, %c0_0] : memref<16x128xbf16, #tpu.memory_space<vmem>>, vector<16x128xbf16>
    %c0_1 = arith.constant 0 : index
    %c0_2 = arith.constant 0 : index
    %1 = vector.load %arg2[%c0_1, %c0_2] : memref<32x16xbf16, #tpu.memory_space<vmem>>, vector<32x16xbf16>
    %cst = arith.constant dense<0.000000e+00> : vector<32x128xf32>
    %2 = tpu.matmul %1, %0, %cst {dimension_numbers = #tpu.dot_dimension_numbers<[1], [0], [0], [1], [0, 0, 1, 1], [], []>} : vector<32x16xbf16>, vector<16x128xbf16>, vector<32x128xf32> -> vector<32x128xf32>
    %c0_3 = arith.constant 0 : index
    %c0_4 = arith.constant 0 : index
    %3 = vector.load %arg3[%c0_3, %c0_4] : memref<32x1xf32, #tpu.memory_space<vmem>>, vector<32x1xf32>
    %4 = vector.broadcast %3 : vector<32x1xf32> to vector<32x128xf32>
    %5 = arith.addf %2, %4 : vector<32x128xf32>
    %cst_5 = arith.constant 0.000000e+00 : f32
    %6 = vector.broadcast %cst_5 : f32 to vector<32x128xf32>
    %7 = arith.maximumf %5, %6 : vector<32x128xf32>
    %c0_6 = arith.constant 0 : index
    %c0_7 = arith.constant 0 : index
    %8 = vector.load %arg4[%c0_6, %c0_7] : memref<16x32xbf16, #tpu.memory_space<vmem>>, vector<16x32xbf16>
    %9 = arith.truncf %7 : vector<32x128xf32> to vector<32x128xbf16>
    %cst_8 = arith.constant dense<0.000000e+00> : vector<16x128xf32>
    %10 = tpu.matmul %8, %9, %cst_8 {dimension_numbers = #tpu.dot_dimension_numbers<[1], [0], [0], [1], [0, 0, 1, 1], [], []>} : vector<16x32xbf16>, vector<32x128xbf16>, vector<16x128xf32> -> vector<16x128xf32>
    %c0_9 = arith.constant 0 : index
    %c0_10 = arith.constant 0 : index
    %11 = vector.load %arg5[%c0_9, %c0_10] : memref<16x1xf32, #tpu.memory_space<vmem>>, vector<16x1xf32>
    %12 = vector.broadcast %11 : vector<16x1xf32> to vector<16x128xf32>
    %13 = arith.addf %10, %12 : vector<16x128xf32>
    %cst_11 = arith.constant 0.000000e+00 : f32
    %14 = vector.broadcast %cst_11 : f32 to vector<16x128xf32>
    %15 = arith.maximumf %13, %14 : vector<16x128xf32>
    %c0_12 = arith.constant 0 : index
    %c0_13 = arith.constant 0 : index
    %16 = vector.load %arg6[%c0_12, %c0_13] : memref<8x16xbf16, #tpu.memory_space<vmem>>, vector<8x16xbf16>
    %17 = arith.truncf %15 : vector<16x128xf32> to vector<16x128xbf16>
    %cst_14 = arith.constant dense<0.000000e+00> : vector<8x128xf32>
    %18 = tpu.matmul %16, %17, %cst_14 {dimension_numbers = #tpu.dot_dimension_numbers<[1], [0], [0], [1], [0, 0, 1, 1], [], []>} : vector<8x16xbf16>, vector<16x128xbf16>, vector<8x128xf32> -> vector<8x128xf32>
    %c0_15 = arith.constant 0 : index
    %c0_16 = arith.constant 0 : index
    %19 = vector.load %arg7[%c0_15, %c0_16] : memref<8x1xf32, #tpu.memory_space<vmem>>, vector<8x1xf32>
    %20 = vector.broadcast %19 : vector<8x1xf32> to vector<8x128xf32>
    %21 = arith.addf %18, %20 : vector<8x128xf32>
    %cst_17 = arith.constant 0.000000e+00 : f32
    %22 = vector.broadcast %cst_17 : f32 to vector<8x128xf32>
    %23 = arith.maximumf %21, %22 : vector<8x128xf32>
    %c0_18 = arith.constant 0 : index
    %c0_19 = arith.constant 0 : index
    %24 = vector.load %arg8[%c0_18, %c0_19] : memref<8x1xf32, #tpu.memory_space<vmem>>, vector<8x1xf32>
    %25 = vector.broadcast %24 : vector<8x1xf32> to vector<8x128xf32>
    %26 = arith.mulf %23, %25 : vector<8x128xf32>
    %cst_20 = arith.constant dense<0.000000e+00> : vector<128xf32>
    %27 = vector.multi_reduction <add>, %26, %cst_20 [0] : vector<8x128xf32> to vector<128xf32>
    %28 = vector.shape_cast %27 : vector<128xf32> to vector<1x128xf32>
    %c0_21 = arith.constant 0 : index
    %c0_22 = arith.constant 0 : index
    %29 = vector.load %arg9[%c0_21, %c0_22] : memref<1x1xf32, #tpu.memory_space<vmem>>, vector<1x1xf32>
    %30 = vector.broadcast %29 : vector<1x1xf32> to vector<1x128xf32>
    %31 = arith.addf %28, %30 : vector<1x128xf32>
    %c0_23 = arith.constant 0 : index
    %c0_24 = arith.constant 0 : index
    %32 = vector.load %arg10[%c0_23, %c0_24] : memref<1x128xf32, #tpu.memory_space<vmem>>, vector<1x128xf32>
    tpu.vector_store %arg10[%c0_23, %c0_24], %31 {strides = array<i32>} : memref<1x128xf32, #tpu.memory_space<vmem>>, vector<1x128xf32>,
    return
  }
  func.func @transform_0(%arg0: i32) -> (i32, i32) {
    %c0_i32 = arith.constant 0 : i32
    %c0_i32_0 = arith.constant 0 : i32
    return %c0_i32, %arg0 : i32, i32
  }
  func.func @transform_1(%arg0: i32) -> (i32, i32) {
    %c0_i32 = arith.constant 0 : i32
    %c0_i32_0 = arith.constant 0 : i32
    %c0_i32_1 = arith.constant 0 : i32
    return %c0_i32, %c0_i32_0 : i32, i32
  }
  func.func @transform_2(%arg0: i32) -> (i32, i32) {
    %c0_i32 = arith.constant 0 : i32
    %c0_i32_0 = arith.constant 0 : i32
    %c0_i32_1 = arith.constant 0 : i32
    return %c0_i32, %c0_i32_0 : i32, i32
  }
  func.func @transform_3(%arg0: i32) -> (i32, i32) {
    %c0_i32 = arith.constant 0 : i32
    %c0_i32_0 = arith.constant 0 : i32
    %c0_i32_1 = arith.constant 0 : i32
    return %c0_i32, %c0_i32_0 : i32, i32
  }
  func.func @transform_4(%arg0: i32) -> (i32, i32) {
    %c0_i32 = arith.constant 0 : i32
    %c0_i32_0 = arith.constant 0 : i32
    %c0_i32_1 = arith.constant 0 : i32
    return %c0_i32, %c0_i32_0 : i32, i32
  }
  func.func @transform_5(%arg0: i32) -> (i32, i32) {
    %c0_i32 = arith.constant 0 : i32
    %c0_i32_0 = arith.constant 0 : i32
    %c0_i32_1 = arith.constant 0 : i32
    return %c0_i32, %c0_i32_0 : i32, i32
  }
  func.func @transform_6(%arg0: i32) -> (i32, i32) {
    %c0_i32 = arith.constant 0 : i32
    %c0_i32_0 = arith.constant 0 : i32
    %c0_i32_1 = arith.constant 0 : i32
    return %c0_i32, %c0_i32_0 : i32, i32
  }
  func.func @transform_7(%arg0: i32) -> (i32, i32) {
    %c0_i32 = arith.constant 0 : i32
    %c0_i32_0 = arith.constant 0 : i32
    %c0_i32_1 = arith.constant 0 : i32
    return %c0_i32, %c0_i32_0 : i32, i32
  }
  func.func @transform_8(%arg0: i32) -> (i32, i32) {
    %c0_i32 = arith.constant 0 : i32
    %c0_i32_0 = arith.constant 0 : i32
    %c0_i32_1 = arith.constant 0 : i32
    return %c0_i32, %c0_i32_0 : i32, i32
  }
  func.func @transform_9(%arg0: i32) -> (i32, i32) {
    %c0_i32 = arith.constant 0 : i32
    %c0_i32_0 = arith.constant 0 : i32
    return %c0_i32, %arg0 : i32, i32
  }
}

</mosaic_0001>

<llo_original>
// kernel: tpu_custom_call.1
$region0: #{tpu_custom_call.1}
  #allocation0 [shape = 'u32[]', space=smem, size = 0x4, offset = 0x4, fixed_abs, tag = 'smem constant byte address 0x4 - core index']
  #allocation1 [shape = 'u32[144,128]{1,0:T(1,128)}', space=vmem, size = 0x12000, scoped, tag = 'internal scratch']
  #allocation2 [shape = 'f32[1,1]{1,0:T(1,128)S(1)}', space=vmem, size = 0x200, scoped, tag = 'scoped memory for tpu_custom_call.1']
  %s0 = inlined_call_operand.vmem [shape: bf16[16,128], index: 0, kind: input, shape index: {}]
  %s1 = inlined_call_operand.vmem [shape: bf16[32,16], index: 1, kind: input, shape index: {}]
  %s2 = inlined_call_operand.vmem [shape: f32[32,1], index: 2, kind: input, shape index: {}]
  %s3 = inlined_call_operand.vmem [shape: bf16[16,32], index: 3, kind: input, shape index: {}]
  %s4 = inlined_call_operand.vmem [shape: f32[16,1], index: 4, kind: input, shape index: {}]
  %s5 = inlined_call_operand.vmem [shape: bf16[8,16], index: 5, kind: input, shape index: {}]
  %s6 = inlined_call_operand.vmem [shape: f32[8,1], index: 6, kind: input, shape index: {}]
  %s7 = inlined_call_operand.vmem [shape: f32[8,1], index: 7, kind: input, shape index: {}]
  %s8 = inlined_call_operand.<no memory space> [shape: f32[1,1], index: 8, kind: input, shape index: {}]
  %s9 = inlined_call_operand.hbm [shape: f32[1,128], index: 9, kind: output, shape index: {}]
  %s10 = sld [smem:[#allocation0]]
  $region46: #{tpu_custom_call.1} parent=0
    _
  %s12 = ssub.s32 1, %s10
  %s13 = scalar_select 0, %s12, %s10
  %v14 = vstv %s8
  %15 = vst [vmem:[#allocation2] sm:$0x1] %v14
  $region1: #{tpu_custom_call.1} parent=0
    #allocation3 [shape = 'u8[512]{0}', space=vmem, size = 0x400, scoped, tag = 'output window, operand 0, single buffered']
    #allocation4 [shape = 's32[1]{0}', space=sflag, size = 0x4, scoped, tag = 'scoped memory for tpu_custom_call.1']
    %16 = vsyncpa [#allocation4], 0
    // Predicated region
    $region2: #{tpu_custom_call.1} parent=1 // pred_check
      _
    $region3: #{tpu_custom_call.1} parent=1 // pred_check_branch
      %18 = sbr.rel (0) target = $region5
    $region4: #{tpu_custom_call.1} parent=1 // pred_region
      _
    $region5: #{tpu_custom_call.1} parent=1 // pred_fallthru
      _
    // Predicated region
    $region6: #{tpu_custom_call.1} parent=1 // pred_check
      _
    $region7: #{tpu_custom_call.1} parent=1 // pred_check_branch
      %20 = sbr.rel (0) target = $region9
    $region8: #{tpu_custom_call.1} parent=1 // pred_region
      _
    $region9: #{tpu_custom_call.1} parent=1 // pred_fallthru
      _
    // Predicated region
    $region10: #{tpu_custom_call.1} parent=1 // pred_check
      _
    $region11: #{tpu_custom_call.1} parent=1 // pred_check_branch
      %22 = sbr.rel (0) target = $region13
    $region12: #{tpu_custom_call.1} parent=1 // pred_region
      _
    $region13: #{tpu_custom_call.1} parent=1 // pred_fallthru
      _
    // Predicated region
    $region14: #{tpu_custom_call.1} parent=1 // pred_check
      _
    $region15: #{tpu_custom_call.1} parent=1 // pred_check_branch
      %24 = sbr.rel (0) target = $region17
    $region16: #{tpu_custom_call.1} parent=1 // pred_region
      _
    $region17: #{tpu_custom_call.1} parent=1 // pred_fallthru
      _
    // Predicated region
    $region18: #{tpu_custom_call.1} parent=1 // pred_check
      _
    $region19: #{tpu_custom_call.1} parent=1 // pred_check_branch
      %26 = sbr.rel (0) target = $region21
    $region20: #{tpu_custom_call.1} parent=1 // pred_region
      _
    $region21: #{tpu_custom_call.1} parent=1 // pred_fallthru
      _
    // Predicated region
    $region22: #{tpu_custom_call.1} parent=1 // pred_check
      _
    $region23: #{tpu_custom_call.1} parent=1 // pred_check_branch
      %28 = sbr.rel (0) target = $region25
    $region24: #{tpu_custom_call.1} parent=1 // pred_region
      _
    $region25: #{tpu_custom_call.1} parent=1 // pred_fallthru
      _
    // Predicated region
    $region26: #{tpu_custom_call.1} parent=1 // pred_check
      _
    $region27: #{tpu_custom_call.1} parent=1 // pred_check_branch
      %30 = sbr.rel (0) target = $region29
    $region28: #{tpu_custom_call.1} parent=1 // pred_region
      _
    $region29: #{tpu_custom_call.1} parent=1 // pred_fallthru
      _
    // Predicated region
    $region30: #{tpu_custom_call.1} parent=1 // pred_check
      _
    $region31: #{tpu_custom_call.1} parent=1 // pred_check_branch
      %32 = sbr.rel (0) target = $region33
    $region32: #{tpu_custom_call.1} parent=1 // pred_region
      _
    $region33: #{tpu_custom_call.1} parent=1 // pred_fallthru
      _
    // Predicated region
    $region34: #{tpu_custom_call.1} parent=1 // pred_check
      _
    $region35: #{tpu_custom_call.1} parent=1 // pred_check_branch
      %34 = sbr.rel (0) target = $region37
    $region36: #{tpu_custom_call.1} parent=1 // pred_region
      _
    $region37: #{tpu_custom_call.1} parent=1 // pred_fallthru
      _
    %v36 = vld [vmem:[%s0] sm:$0xf]
    %v37 = vld [vmem:[%s0 + $0x4] sm:$0xf]
    %v38 = vld [vmem:[%s1] sm:$0xf]
    %v39 = vld [vmem:[%s1 + $0x4] sm:$0xf]
    %v40 = vld [vmem:[%s1 + $0x8] sm:$0xf]
    %v41 = vld [vmem:[%s1 + $0xc] sm:$0xf]
    %v42 = vld [vmem:[%s2] sm:$0xff]
    %v43 = vld [vmem:[%s2 + $0x8] sm:$0xff]
    %v44 = vld [vmem:[%s2 + $0x10] sm:$0xff]
    %v45 = vld [vmem:[%s2 + $0x18] sm:$0xff]
    %47 = vset.pattern.permute.xlu0 0
    %48 = vperm.xlu0 %47, %v42
    %v49 = vpop.permute.xlu0 %48
    %52 = vset.pattern.permute.xlu0 0
    %53 = vperm.xlu0 %52, %v43
    %v54 = vpop.permute.xlu0 %53
    %57 = vset.pattern.permute.xlu0 0
    %58 = vperm.xlu0 %57, %v44
    %v59 = vpop.permute.xlu0 %58
    %62 = vset.pattern.permute.xlu0 0
    %63 = vperm.xlu0 %62, %v45
    %v64 = vpop.permute.xlu0 %63
    %v70 = vunpack.c.l.b16 %v38
    %v71 = vunpack.c.l.b16 %v39
    %v72 = vunpack.c.l.b16 %v40
    %v73 = vunpack.c.l.b16 %v41
    %v74 = vpack.c.b16 %v71, %v70
    %v75 = vpack.c.b16 %v73, %v72
    %v78 = vunpack.c.l.b16 %v36
    %v79 = vunpack.c.l.b16 %v37
    %v80 = vpack.c.b16 %v79, %v78
    %vm82 = vcmask 130048
    %v84 = vsel %vm82, %v74, 0
    %v87 = vsel %vm82, %v75, 0
    %89 = vmatprep.subr.bf16.mxu0 0
    %90 = vmatpush1.bf16.msra.mxu0 %v80
    %91 = vmatprep.subr.bf16.mxu0 0
    %92 = vmatpush1.bf16.msra.mxu0 0
    %93 = vmatprep.subr.bf16.mxu0 0
    %94 = vmatpush1.bf16.msra.mxu0 0
    %95 = vmatprep.subr.bf16.mxu0 0
    %96 = vmatpush1.bf16.msra.mxu0 0
    %97 = vmatprep.subr.bf16.mxu0 0
    %98 = vmatpush1.bf16.msra.mxu0 0
    %99 = vmatprep.subr.bf16.mxu0 0
    %100 = vmatpush1.bf16.msra.mxu0 0
    %101 = vmatprep.subr.bf16.mxu0 0
    %102 = vmatpush1.bf16.msra.mxu0 0
    %103 = vmatprep.subr.bf16.mxu0 0
    %104 = vmatpush1.bf16.msra.mxu0 0
    %105 = vmatprep.subr.bf16.mxu0 0
    %106 = vmatpush1.bf16.msra.mxu0 0
    %107 = vmatprep.subr.bf16.mxu0 0
    %108 = vmatpush1.bf16.msra.mxu0 0
    %109 = vmatprep.subr.bf16.mxu0 0
    %110 = vmatpush1.bf16.msra.mxu0 0
    %111 = vmatprep.subr.bf16.mxu0 0
    %112 = vmatpush1.bf16.msra.mxu0 0
    %113 = vmatprep.subr.bf16.mxu0 0
    %114 = vmatpush1.bf16.msra.mxu0 0
    %115 = vmatprep.subr.bf16.mxu0 0
    %116 = vmatpush1.bf16.msra.mxu0 0
    %117 = vmatprep.subr.bf16.mxu0 0
    %118 = vmatpush1.bf16.msra.mxu0 0
    %119 = vmatprep.subr.bf16.mxu0 0
    %120 = vmatpush1.bf16.msra.mxu0 0
    %121 = vmatprep.mubr.bf16.mxu0 0
    %122 = vmatmul.mubr.bf16.gmra.mrb[0].mxu0 %v84
    %v123 = vpop.f32.mrb[0].mxu0
    %v124 = vadd.f32 %v49, %v123
    %v125 = vpop.f32.mrb[0].mxu0
    %v126 = vpop.f32.mrb[0].mxu0
    %v127 = vadd.f32 %v54, %v126
    %v128 = vpop.f32.mrb[0].mxu0
    %129 = vmatprep.mubr.bf16.mxu0 0
    %130 = vmatmul.mubr.bf16.gmra.mrb[0].mxu0 %v87
    %v131 = vpop.f32.mrb[0].mxu0
    %v132 = vadd.f32 %v59, %v131
    %v133 = vpop.f32.mrb[0].mxu0
    %v134 = vpop.f32.mrb[0].mxu0
    %v135 = vadd.f32 %v64, %v134
    %v136 = vpop.f32.mrb[0].mxu0
    %137 = vdwg.mxu0
    %v138 = vmax.f32 %v124, 0.0
    %v139 = vmax.f32 %v127, 0.0
    %v140 = vmax.f32 %v132, 0.0
    %v141 = vmax.f32 %v135, 0.0
    %v142 = vld [vmem:[%s3] sm:$0xf]
    %v143 = vld [vmem:[%s3 + $0x4] sm:$0xf]
    %v144 = vpack.c.bf16 %v139, %v138
    %v145 = vpack.c.bf16 %v141, %v140
    %v146 = vld [vmem:[%s4] sm:$0xff]
    %v147 = vld [vmem:[%s4 + $0x8] sm:$0xff]
    %149 = vset.pattern.permute.xlu0 0
    %150 = vperm.xlu0 %149, %v146
    %v151 = vpop.permute.xlu0 %150
    %154 = vset.pattern.permute.xlu0 0
    %155 = vperm.xlu0 %154, %v147
    %v156 = vpop.permute.xlu0 %155
    %v160 = vunpack.c.l.b16 %v142
    %v161 = vunpack.c.l.b16 %v143
    %v162 = vpack.c.b16 %v161, %v160
    %vm163 = vcmask 261120
    %v165 = vsel %vm163, %v162, 0
    %167 = vmatprep.subr.bf16.mxu0 0
    %168 = vmatpush1.bf16.msra.mxu0 %v144
    %169 = vmatprep.subr.bf16.mxu0 0
    %170 = vmatpush1.bf16.msra.mxu0 %v145
    %171 = vmatprep.subr.bf16.mxu0 0
    %172 = vmatpush1.bf16.msra.mxu0 0
    %173 = vmatprep.subr.bf16.mxu0 0
    %174 = vmatpush1.bf16.msra.mxu0 0
    %175 = vmatprep.subr.bf16.mxu0 0
    %176 = vmatpush1.bf16.msra.mxu0 0
    %177 = vmatprep.subr.bf16.mxu0 0
    %178 = vmatpush1.bf16.msra.mxu0 0
    %179 = vmatprep.subr.bf16.mxu0 0
    %180 = vmatpush1.bf16.msra.mxu0 0
    %181 = vmatprep.subr.bf16.mxu0 0
    %182 = vmatpush1.bf16.msra.mxu0 0
    %183 = vmatprep.subr.bf16.mxu0 0
    %184 = vmatpush1.bf16.msra.mxu0 0
    %185 = vmatprep.subr.bf16.mxu0 0
    %186 = vmatpush1.bf16.msra.mxu0 0
    %187 = vmatprep.subr.bf16.mxu0 0
    %188 = vmatpush1.bf16.msra.mxu0 0
    %189 = vmatprep.subr.bf16.mxu0 0
    %190 = vmatpush1.bf16.msra.mxu0 0
    %191 = vmatprep.subr.bf16.mxu0 0
    %192 = vmatpush1.bf16.msra.mxu0 0
    %193 = vmatprep.subr.bf16.mxu0 0
    %194 = vmatpush1.bf16.msra.mxu0 0
    %195 = vmatprep.subr.bf16.mxu0 0
    %196 = vmatpush1.bf16.msra.mxu0 0
    %197 = vmatprep.subr.bf16.mxu0 0
    %198 = vmatpush1.bf16.msra.mxu0 0
    %199 = vmatprep.mubr.bf16.mxu0 0
    %200 = vmatmul.mubr.bf16.gmra.mrb[0].mxu0 %v165
    %v201 = vpop.f32.mrb[0].mxu0
    %v202 = vadd.f32 %v151, %v201
    %v203 = vpop.f32.mrb[0].mxu0
    %v204 = vpop.f32.mrb[0].mxu0
    %v205 = vadd.f32 %v156, %v204
    %v206 = vpop.f32.mrb[0].mxu0
    %207 = vdwg.mxu0
    %v208 = vmax.f32 %v202, 0.0
    %v209 = vmax.f32 %v205, 0.0
    %v210 = vld [vmem:[%s5] sm:$0xf]
    %v211 = vpack.c.bf16 %v209, %v208
    %v212 = vld [vmem:[%s6] sm:$0xff]
    %214 = vset.pattern.permute.xlu0 0
    %215 = vperm.xlu0 %214, %v212
    %v216 = vpop.permute.xlu0 %215
    %v219 = vsel %vm82, %v210, 0
    %221 = vmatprep.subr.bf16.mxu0 0
    %222 = vmatpush1.bf16.msra.mxu0 %v211
    %223 = vmatprep.subr.bf16.mxu0 0
    %224 = vmatpush1.bf16.msra.mxu0 0
    %225 = vmatprep.subr.bf16.mxu0 0
    %226 = vmatpush1.bf16.msra.mxu0 0
    %227 = vmatprep.subr.bf16.mxu0 0
    %228 = vmatpush1.bf16.msra.mxu0 0
    %229 = vmatprep.subr.bf16.mxu0 0
    %230 = vmatpush1.bf16.msra.mxu0 0
    %231 = vmatprep.subr.bf16.mxu0 0
    %232 = vmatpush1.bf16.msra.mxu0 0
    %233 = vmatprep.subr.bf16.mxu0 0
    %234 = vmatpush1.bf16.msra.mxu0 0
    %235 = vmatprep.subr.bf16.mxu0 0
    %236 = vmatpush1.bf16.msra.mxu0 0
    %237 = vmatprep.subr.bf16.mxu0 0
    %238 = vmatpush1.bf16.msra.mxu0 0
    %239 = vmatprep.subr.bf16.mxu0 0
    %240 = vmatpush1.bf16.msra.mxu0 0
    %241 = vmatprep.subr.bf16.mxu0 0
    %242 = vmatpush1.bf16.msra.mxu0 0
    %243 = vmatprep.subr.bf16.mxu0 0
    %244 = vmatpush1.bf16.msra.mxu0 0
    %245 = vmatprep.subr.bf16.mxu0 0
    %246 = vmatpush1.bf16.msra.mxu0 0
    %247 = vmatprep.subr.bf16.mxu0 0
    %248 = vmatpush1.bf16.msra.mxu0 0
    %249 = vmatprep.subr.bf16.mxu0 0
    %250 = vmatpush1.bf16.msra.mxu0 0
    %251 = vmatprep.subr.bf16.mxu0 0
    %252 = vmatpush1.bf16.msra.mxu0 0
    %253 = vmatprep.mubr.bf16.mxu0 0
    %254 = vmatmul.mubr.bf16.gmra.mrb[0].mxu0 %v219
    %v255 = vpop.f32.mrb[0].mxu0
    %v256 = vadd.f32 %v216, %v255
    %v257 = vpop.f32.mrb[0].mxu0
    %v258 = vpop.f32.mrb[0].mxu0
    %v259 = vpop.f32.mrb[0].mxu0
    %260 = vdwg.mxu0
    %v261 = vmax.f32 %v256, 0.0
    %v262 = vld [vmem:[%s7] sm:$0xff]
    %264 = vset.pattern.permute.xlu0 0
    %265 = vperm.xlu0 %264, %v262
    %v266 = vpop.permute.xlu0 %265
    %v268 = vmul.f32 %v261, %v266
    %v269 = vrot.slane %v268, 4
    %v270 = vadd.f32 %v268, %v269
    %v271 = vrot.slane %v270, 2
    %v272 = vadd.f32 %v270, %v271
    %v273 = vrot.slane %v272, 1
    %v274 = vadd.f32 %v272, %v273
    %v275 = vld [vmem:[#allocation2] sm:$0x1]
    %277 = vset.pattern.permute.xlu0 0
    %278 = vperm.xlu0 %277, %v275
    %v279 = vpop.permute.xlu0 %278
    %v281 = vlaneseq
    %v282 = vshrl.u32 %v281, 7
    %v283 = vsub.s32 0, %v282
    %v284 = vrot.slane %v279, %v283
    %v285 = vadd.f32 %v274, %v284
    %286 = vst [vmem:[#allocation3] sm:$0x1] %v285
    // Predicated region
    $region38: #{tpu_custom_call.1} parent=1 // pred_check
      _
    $region39: #{tpu_custom_call.1} parent=1 // pred_check_branch
      %288 = sbr.rel (0) target = $region41
    $region40: #{tpu_custom_call.1} parent=1 // pred_region
      %s290 = ssub.s32 16, 16
      %291 = vsyncadd [#allocation4], %s290
      %s293 = sshll.u32 [#allocation3], 4
      %s294 = int_to_ptr.vmem [resolvable:$true] %s293
      %296 = dma.vmem_to_hbm [thread:$0]  %s294, 16, %s9, [#allocation4]
    $region41: #{tpu_custom_call.1} parent=1 // pred_fallthru
      _
    // Predicated region
    $region42: #{tpu_custom_call.1} parent=1 // pred_check
      _
    $region43: #{tpu_custom_call.1} parent=1 // pred_check_branch
      %298 = sbr.rel (0) target = $region45
    $region44: #{tpu_custom_call.1} parent=1 // pred_region
      %299 = dma.done [#allocation4], 16
    $region45: #{tpu_custom_call.1} parent=1 // pred_fallthru
      _
    %300 = vsyncpa [#allocation4], 1

</llo_original>
